<compile_context>
chip_gen: v7x
topology: tpu7x:2x2x1
jax: 0.10.0
libtpu: 0.0.40
codegen_flags: <defaults>
</compile_context>

<pallas_src>
import functools

import jax
import jax.numpy as jnp
from jax.experimental import pallas as pl
from jax.experimental.pallas import tpu as pltpu

INPUT_SIZE = 4
HIDDEN_SIZE = 30
OUTPUT_SIZE = 3

# Only the hidden dim (a pure VMEM/compute dim) is padded to a sublane multiple.
HID_PAD = 32


def _round_up(n, m):
    return ((n + m - 1) // m) * m


def mlp_kernel(x_ref, w1_ref, b1_ref, w2_ref, b2_ref, o_ref):
    # x_ref:  (INPUT_SIZE, TILE_B)    batch on the lane axis
    # w1_ref: (HID_PAD, INPUT_SIZE)   PyTorch (out, in) convention, hidden-padded
    # b1_ref: (HID_PAD, 1)
    # w2_ref: (OUTPUT_SIZE, HID_PAD)
    # b2_ref: (OUTPUT_SIZE, 1)
    # o_ref:  (OUTPUT_SIZE, TILE_B)
    x = x_ref[...].astype(jnp.float32)
    h = jnp.dot(w1_ref[...].astype(jnp.float32), x,
                preferred_element_type=jnp.float32)
    h = jnp.maximum(h + b1_ref[...].astype(jnp.float32), 0.0)      # fc1 + ReLU
    y = jnp.dot(w2_ref[...].astype(jnp.float32), h,
                preferred_element_type=jnp.float32)
    y = y + b2_ref[...].astype(jnp.float32)                        # fc2
    o_ref[...] = jnp.clip(y, -1.0, 1.0).astype(o_ref.dtype)        # Hardtanh


@functools.partial(jax.jit, static_argnames=("tile_b",))
def mlp_forward(x, w1, b1, w2, b2, *, tile_b=16384):
    """x: (B, 4). w1: (30, 4), b1: (30,), w2: (3, 30), b2: (3,) — nn.Linear layout."""
    B = x.shape[0]
    dtype = x.dtype
    itemsize = jnp.dtype(dtype).itemsize

    # Batch tile on the lane axis: multiple of 128, no over-padding of tiny
    # batches, large by default (16K lanes) to amortize per-grid-step overhead.
    b128 = _round_up(B, 128)
    tb = max(128, min(int(tile_b), b128))
    # v7x megacore: keep >= 2 grid steps when the batch is large enough so the
    # "parallel" axis can be sharded across both TensorCores.
    if tb >= b128 and b128 >= 256:
        tb = _round_up((b128 + 1) // 2, 128)
    b_pad = _round_up(B, tb)

    # Batch on lanes; NO feature padding in HBM (full-dim blocks are legal).
    # Pad only the batch columns when needed.
    # TODO(synk): propagate a (features, batch) layout from the producer so the
    # wrapper transpose pass over x disappears entirely.
    x_t = x.T
    if b_pad != B:
        x_t = jnp.pad(x_t, ((0, 0), (0, b_pad - B)))

    # Tiny weights/biases: pad only the hidden dim (30 -> 32). They stay
    # VMEM-resident via constant index maps; zero padding is inert.
    w1_p = jnp.zeros((HID_PAD, INPUT_SIZE), dtype).at[:HIDDEN_SIZE, :].set(w1)
    b1_p = jnp.zeros((HID_PAD, 1), dtype).at[:HIDDEN_SIZE, 0].set(b1)
    w2_p = jnp.zeros((OUTPUT_SIZE, HID_PAD), dtype).at[:, :HIDDEN_SIZE].set(w2)
    b2_p = b2.reshape(OUTPUT_SIZE, 1).astype(dtype)

    grid = (b_pad // tb,)

    flops = 2 * B * (INPUT_SIZE * HIDDEN_SIZE + HIDDEN_SIZE * OUTPUT_SIZE)
    bytes_accessed = itemsize * (x_t.size + OUTPUT_SIZE * b_pad
                                 + w1_p.size + b1_p.size + w2_p.size + b2_p.size)

    # Rough per-step VMEM need: double-buffered x/out blocks + resident weights
    # + the (HID_PAD, tile_b) fc1 intermediate (+ slack). Only set an explicit
    # limit when it approaches v5e's 16 MiB scoped default.
    vmem_est = tb * (2 * INPUT_SIZE * itemsize + 2 * OUTPUT_SIZE * itemsize
                     + (HID_PAD + OUTPUT_SIZE + 8) * 4) + (64 << 10)
    cp_kwargs = dict(dimension_semantics=("parallel",))
    if vmem_est > (12 << 20):
        cp_kwargs["vmem_limit_bytes"] = min(int(vmem_est * 1.25), 56 << 20)

    out_t = pl.pallas_call(
        mlp_kernel,
        out_shape=jax.ShapeDtypeStruct((OUTPUT_SIZE, b_pad), dtype),
        grid=grid,
        in_specs=[
            pl.BlockSpec((INPUT_SIZE, tb), lambda i: (0, i)),     # x tiles stream
            pl.BlockSpec((HID_PAD, INPUT_SIZE), lambda i: (0, 0)),  # weights resident
            pl.BlockSpec((HID_PAD, 1), lambda i: (0, 0)),
            pl.BlockSpec((OUTPUT_SIZE, HID_PAD), lambda i: (0, 0)),
            pl.BlockSpec((OUTPUT_SIZE, 1), lambda i: (0, 0)),
        ],
        out_specs=pl.BlockSpec((OUTPUT_SIZE, tb), lambda i: (0, i)),
        compiler_params=pltpu.CompilerParams(**cp_kwargs),
        cost_estimate=pl.CostEstimate(
            flops=flops, transcendentals=0, bytes_accessed=bytes_accessed),
    )(x_t, w1_p, b1_p, w2_p, b2_p)

    # Un-pad: columns 0:B are the real batch.
    return out_t[:, :B].T


def init_params(key):
    """nn.Linear-style U(-1/sqrt(fan_in), 1/sqrt(fan_in)) init, (out, in) layout."""
    k1, k2, k3, k4 = jax.random.split(key, 4)
    bound1 = 1.0 / jnp.sqrt(INPUT_SIZE)
    bound2 = 1.0 / jnp.sqrt(HIDDEN_SIZE)
    w1 = jax.random.uniform(k1, (HIDDEN_SIZE, INPUT_SIZE), jnp.float32, -bound1, bound1)
    b1 = jax.random.uniform(k2, (HIDDEN_SIZE,), jnp.float32, -bound1, bound1)
    w2 = jax.random.uniform(k3, (OUTPUT_SIZE, HIDDEN_SIZE), jnp.float32, -bound2, bound2)
    b2 = jax.random.uniform(k4, (OUTPUT_SIZE,), jnp.float32, -bound2, bound2)
    return w1, b1, w2, b2


def mlp_reference(x, w1, b1, w2, b2):
    h = jnp.maximum(x @ w1.T + b1, 0.0)
    return jnp.clip(h @ w2.T + b2, -1.0, 1.0)


if __name__ == "__main__":
    key = jax.random.PRNGKey(0)
    kx, kp = jax.random.split(key)
    w1, b1, w2, b2 = init_params(kp)

    # Small shape consistent with the module's forward.
    batch = 8
    x = jax.random.normal(kx, (batch, INPUT_SIZE), jnp.float32)
    out = jax.block_until_ready(mlp_forward(x, w1, b1, w2, b2))
    ref = mlp_reference(x, w1, b1, w2, b2)
    assert out.shape == (batch, OUTPUT_SIZE)
    assert jnp.allclose(out, ref, atol=1e-5, rtol=1e-5)

    # Exercise the multi-tile path (batch padding + >=2 grid steps).
    batch2 = 300
    x2 = jax.random.normal(kx, (batch2, INPUT_SIZE), jnp.float32)
    out2 = jax.block_until_ready(mlp_forward(x2, w1, b1, w2, b2))
    ref2 = mlp_reference(x2, w1, b1, w2, b2)
    assert out2.shape == (batch2, OUTPUT_SIZE)
    assert jnp.allclose(out2, ref2, atol=1e-5, rtol=1e-5)

    print("KERNEL_OK")
</pallas_src>

<mosaic_0001>
module attributes {stable_mosaic.version = 11 : i64} {
  func.func @mlp_kernel(%arg0: i32, %arg1: memref<4x128xf32, #tpu.memory_space<vmem>>, %arg2: memref<32x4xf32, #tpu.memory_space<vmem>>, %arg3: memref<32x1xf32, #tpu.memory_space<vmem>>, %arg4: memref<3x32xf32, #tpu.memory_space<vmem>>, %arg5: memref<3x1xf32, #tpu.memory_space<vmem>>, %arg6: memref<3x128xf32, #tpu.memory_space<vmem>>) attributes {dimension_semantics = [#tpu.dimension_semantics<parallel>], iteration_bounds = array<i64: 1>, scalar_prefetch = 0 : i64, scratch_operands = 0 : i64, tpu.core_type = #tpu.core_type<tc>, window_params = [{transform_indices = @transform_0, window_bounds = array<i64: 4, 128>}, {pipeline_mode = #tpu.pipeline_mode<synchronous>, transform_indices = @transform_1, window_bounds = array<i64: 32, 4>}, {pipeline_mode = #tpu.pipeline_mode<synchronous>, transform_indices = @transform_2, window_bounds = array<i64: 32, 1>}, {pipeline_mode = #tpu.pipeline_mode<synchronous>, transform_indices = @transform_3, window_bounds = array<i64: 3, 32>}, {pipeline_mode = #tpu.pipeline_mode<synchronous>, transform_indices = @transform_4, window_bounds = array<i64: 3, 1>}, {transform_indices = @transform_5, window_bounds = array<i64: 3, 128>}]} {
    %c0 = arith.constant 0 : index
    %c0_0 = arith.constant 0 : index
    %0 = vector.load %arg1[%c0, %c0_0] : memref<4x128xf32, #tpu.memory_space<vmem>>, vector<4x128xf32>
    %c0_1 = arith.constant 0 : index
    %c0_2 = arith.constant 0 : index
    %1 = vector.load %arg2[%c0_1, %c0_2] : memref<32x4xf32, #tpu.memory_space<vmem>>, vector<32x4xf32>
    %cst = arith.constant dense<0.000000e+00> : vector<32x128xf32>
    %2 = tpu.matmul %1, %0, %cst {dimension_numbers = #tpu.dot_dimension_numbers<[1], [0], [0], [1], [0, 0, 1, 1], [], []>} : vector<32x4xf32>, vector<4x128xf32>, vector<32x128xf32> -> vector<32x128xf32>
    %c0_3 = arith.constant 0 : index
    %c0_4 = arith.constant 0 : index
    %3 = vector.load %arg3[%c0_3, %c0_4] : memref<32x1xf32, #tpu.memory_space<vmem>>, vector<32x1xf32>
    %4 = vector.broadcast %3 : vector<32x1xf32> to vector<32x128xf32>
    %5 = arith.addf %2, %4 : vector<32x128xf32>
    %cst_5 = arith.constant 0.000000e+00 : f32
    %6 = vector.broadcast %cst_5 : f32 to vector<32x128xf32>
    %7 = arith.maximumf %5, %6 : vector<32x128xf32>
    %c0_6 = arith.constant 0 : index
    %c0_7 = arith.constant 0 : index
    %8 = vector.load %arg4[%c0_6, %c0_7] : memref<3x32xf32, #tpu.memory_space<vmem>>, vector<3x32xf32>
    %cst_8 = arith.constant dense<0.000000e+00> : vector<3x128xf32>
    %9 = tpu.matmul %8, %7, %cst_8 {dimension_numbers = #tpu.dot_dimension_numbers<[1], [0], [0], [1], [0, 0, 1, 1], [], []>} : vector<3x32xf32>, vector<32x128xf32>, vector<3x128xf32> -> vector<3x128xf32>
    %c0_9 = arith.constant 0 : index
    %c0_10 = arith.constant 0 : index
    %10 = vector.load %arg5[%c0_9, %c0_10] : memref<3x1xf32, #tpu.memory_space<vmem>>, vector<3x1xf32>
    %11 = vector.broadcast %10 : vector<3x1xf32> to vector<3x128xf32>
    %12 = arith.addf %9, %11 : vector<3x128xf32>
    %cst_11 = arith.constant -1.000000e+00 : f32
    %cst_12 = arith.constant 1.000000e+00 : f32
    %13 = vector.broadcast %cst_11 : f32 to vector<3x128xf32>
    %14 = arith.maximumf %13, %12 : vector<3x128xf32>
    %15 = vector.broadcast %cst_12 : f32 to vector<3x128xf32>
    %16 = arith.minimumf %15, %14 : vector<3x128xf32>
    %c0_13 = arith.constant 0 : index
    %c0_14 = arith.constant 0 : index
    %17 = vector.load %arg6[%c0_13, %c0_14] : memref<3x128xf32, #tpu.memory_space<vmem>>, vector<3x128xf32>
    tpu.vector_store %arg6[%c0_13, %c0_14], %16 {strides = array<i32>} : memref<3x128xf32, #tpu.memory_space<vmem>>, vector<3x128xf32>,
    return
  }
  func.func @transform_0(%arg0: i32) -> (i32, i32) {
    %c0_i32 = arith.constant 0 : i32
    %c0_i32_0 = arith.constant 0 : i32
    return %c0_i32, %arg0 : i32, i32
  }
  func.func @transform_1(%arg0: i32) -> (i32, i32) {
    %c0_i32 = arith.constant 0 : i32
    %c0_i32_0 = arith.constant 0 : i32
    %c0_i32_1 = arith.constant 0 : i32
    return %c0_i32, %c0_i32_0 : i32, i32
  }
  func.func @transform_2(%arg0: i32) -> (i32, i32) {
    %c0_i32 = arith.constant 0 : i32
    %c0_i32_0 = arith.constant 0 : i32
    %c0_i32_1 = arith.constant 0 : i32
    return %c0_i32, %c0_i32_0 : i32, i32
  }
  func.func @transform_3(%arg0: i32) -> (i32, i32) {
    %c0_i32 = arith.constant 0 : i32
    %c0_i32_0 = arith.constant 0 : i32
    %c0_i32_1 = arith.constant 0 : i32
    return %c0_i32, %c0_i32_0 : i32, i32
  }
  func.func @transform_4(%arg0: i32) -> (i32, i32) {
    %c0_i32 = arith.constant 0 : i32
    %c0_i32_0 = arith.constant 0 : i32
    %c0_i32_1 = arith.constant 0 : i32
    return %c0_i32, %c0_i32_0 : i32, i32
  }
  func.func @transform_5(%arg0: i32) -> (i32, i32) {
    %c0_i32 = arith.constant 0 : i32
    %c0_i32_0 = arith.constant 0 : i32
    return %c0_i32, %arg0 : i32, i32
  }
}

</mosaic_0001>

<llo_original>
// kernel: mlp_forward.1
$region0: #{mlp_forward.1}
  #allocation0 [shape = 'u32[]', space=smem, size = 0x4, offset = 0x4, fixed_abs, tag = 'smem constant byte address 0x4 - core index']
  #allocation1 [shape = 'u32[144,128]{1,0:T(1,128)}', space=vmem, size = 0x12000, scoped, tag = 'internal scratch']
  %s0 = inlined_call_operand.vmem [shape: f32[4,128], index: 0, kind: input, shape index: {}]
  %s1 = inlined_call_operand.vmem [shape: f32[32,4], index: 1, kind: input, shape index: {}]
  %s2 = inlined_call_operand.vmem [shape: f32[32,1], index: 2, kind: input, shape index: {}]
  %s3 = inlined_call_operand.vmem [shape: f32[3,32], index: 3, kind: input, shape index: {}]
  %s4 = inlined_call_operand.vmem [shape: f32[3,1], index: 4, kind: input, shape index: {}]
  %s5 = inlined_call_operand.vmem [shape: f32[3,128], index: 5, kind: output, shape index: {}]
  %s6 = sld [smem:[#allocation0]]
  $region30: #{mlp_forward.1} parent=0
    _
  %s8 = ssub.s32 1, %s6
  %s9 = scalar_select 0, %s8, %s6
  // Predicated region
  $region2: #{mlp_forward.1} parent=0 // pred_check
    _
  $region3: #{mlp_forward.1} parent=0 // pred_check_branch
    %11 = sbr.rel (0) target = $region5
  $region4: #{mlp_forward.1} parent=0 // pred_region
    _
  $region5: #{mlp_forward.1} parent=0 // pred_fallthru
    _
  // Predicated region
  $region6: #{mlp_forward.1} parent=0 // pred_check
    _
  $region7: #{mlp_forward.1} parent=0 // pred_check_branch
    %13 = sbr.rel (0) target = $region9
  $region8: #{mlp_forward.1} parent=0 // pred_region
    _
  $region9: #{mlp_forward.1} parent=0 // pred_fallthru
    _
  // Predicated region
  $region10: #{mlp_forward.1} parent=0 // pred_check
    _
  $region11: #{mlp_forward.1} parent=0 // pred_check_branch
    %15 = sbr.rel (0) target = $region13
  $region12: #{mlp_forward.1} parent=0 // pred_region
    _
  $region13: #{mlp_forward.1} parent=0 // pred_fallthru
    _
  // Predicated region
  $region14: #{mlp_forward.1} parent=0 // pred_check
    _
  $region15: #{mlp_forward.1} parent=0 // pred_check_branch
    %17 = sbr.rel (0) target = $region17
  $region16: #{mlp_forward.1} parent=0 // pred_region
    _
  $region17: #{mlp_forward.1} parent=0 // pred_fallthru
    _
  // Predicated region
  $region18: #{mlp_forward.1} parent=0 // pred_check
    _
  $region19: #{mlp_forward.1} parent=0 // pred_check_branch
    %19 = sbr.rel (0) target = $region21
  $region20: #{mlp_forward.1} parent=0 // pred_region
    _
  $region21: #{mlp_forward.1} parent=0 // pred_fallthru
    _
  %v20 = vld [vmem:[%s0] sm:$0xf]
  %v21 = vld [vmem:[%s1] sm:$0xff]
  %v22 = vld [vmem:[%s1 + $0x8] sm:$0xff]
  %v23 = vld [vmem:[%s1 + $0x10] sm:$0xff]
  %v24 = vld [vmem:[%s1 + $0x18] sm:$0xff]
  %v25 = vld [vmem:[%s2] sm:$0xff]
  %v26 = vld [vmem:[%s2 + $0x8] sm:$0xff]
  %v27 = vld [vmem:[%s2 + $0x10] sm:$0xff]
  %v28 = vld [vmem:[%s2 + $0x18] sm:$0xff]
  %30 = vset.pattern.permute.xlu0 0
  %31 = vperm.xlu0 %30, %v25
  %v32 = vpop.permute.xlu0 %31
  %35 = vset.pattern.permute.xlu0 0
  %36 = vperm.xlu0 %35, %v26
  %v37 = vpop.permute.xlu0 %36
  %40 = vset.pattern.permute.xlu0 0
  %41 = vperm.xlu0 %40, %v27
  %v42 = vpop.permute.xlu0 %41
  %45 = vset.pattern.permute.xlu0 0
  %46 = vperm.xlu0 %45, %v28
  %v47 = vpop.permute.xlu0 %46
  %vm49 = vcmask 31744
  %v51 = vsel %vm49, %v21, 0
  %v54 = vsel %vm49, %v22, 0
  %v57 = vsel %vm49, %v23, 0
  %v60 = vsel %vm49, %v24, 0
  %vm62 = vcmask 1043456
  %v64 = vsel %vm62, %v20, 0
  %66 = vmatprep.subr.mxu0 0.0
  %67 = vmatpush1.msra.mxu0 %v64
  %68 = vmatprep.subr.mxu0 0.0
  %69 = vmatpush1.msra.mxu0 0.0
  %70 = vmatprep.subr.mxu0 0.0
  %71 = vmatpush1.msra.mxu0 0.0
  %72 = vmatprep.subr.mxu0 0.0
  %73 = vmatpush1.msra.mxu0 0.0
  %74 = vmatprep.subr.mxu0 0.0
  %75 = vmatpush1.msra.mxu0 0.0
  %76 = vmatprep.subr.mxu0 0.0
  %77 = vmatpush1.msra.mxu0 0.0
  %78 = vmatprep.subr.mxu0 0.0
  %79 = vmatpush1.msra.mxu0 0.0
  %80 = vmatprep.subr.mxu0 0.0
  %81 = vmatpush1.msra.mxu0 0.0
  %82 = vmatprep.subr.mxu0 0.0
  %83 = vmatpush1.msra.mxu0 0.0
  %84 = vmatprep.subr.mxu0 0.0
  %85 = vmatpush1.msra.mxu0 0.0
  %86 = vmatprep.subr.mxu0 0.0
  %87 = vmatpush1.msra.mxu0 0.0
  %88 = vmatprep.subr.mxu0 0.0
  %89 = vmatpush1.msra.mxu0 0.0
  %90 = vmatprep.subr.mxu0 0.0
  %91 = vmatpush1.msra.mxu0 0.0
  %92 = vmatprep.subr.mxu0 0.0
  %93 = vmatpush1.msra.mxu0 0.0
  %94 = vmatprep.subr.mxu0 0.0
  %95 = vmatpush1.msra.mxu0 0.0
  %96 = vmatprep.subr.mxu0 0.0
  %97 = vmatpush1.msra.mxu0 0.0
  %98 = vmatprep.subr.mxu0 0.0
  %99 = vmatpush1.msra.mxu0 0.0
  %100 = vmatprep.subr.mxu0 0.0
  %101 = vmatpush1.msra.mxu0 0.0
  %102 = vmatprep.subr.mxu0 0.0
  %103 = vmatpush1.msra.mxu0 0.0
  %104 = vmatprep.subr.mxu0 0.0
  %105 = vmatpush1.msra.mxu0 0.0
  %106 = vmatprep.subr.mxu0 0.0
  %107 = vmatpush1.msra.mxu0 0.0
  %108 = vmatprep.subr.mxu0 0.0
  %109 = vmatpush1.msra.mxu0 0.0
  %110 = vmatprep.subr.mxu0 0.0
  %111 = vmatpush1.msra.mxu0 0.0
  %112 = vmatprep.subr.mxu0 0.0
  %113 = vmatpush1.msra.mxu0 0.0
  %114 = vmatprep.subr.mxu0 0.0
  %115 = vmatpush1.msra.mxu0 0.0
  %116 = vmatprep.subr.mxu0 0.0
  %117 = vmatpush1.msra.mxu0 0.0
  %118 = vmatprep.subr.mxu0 0.0
  %119 = vmatpush1.msra.mxu0 0.0
  %120 = vmatprep.subr.mxu0 0.0
  %121 = vmatpush1.msra.mxu0 0.0
  %122 = vmatprep.subr.mxu0 0.0
  %123 = vmatpush1.msra.mxu0 0.0
  %124 = vmatprep.subr.mxu0 0.0
  %125 = vmatpush1.msra.mxu0 0.0
  %126 = vmatprep.subr.mxu0 0.0
  %127 = vmatpush1.msra.mxu0 0.0
  %128 = vmatprep.subr.mxu0 0.0
  %129 = vmatpush1.msra.mxu0 0.0
  %130 = vmatprep.mubr.f32.mxu0 0.0
  %131 = vmatmul.mubr.f32.gmra.mrb[0].mxu0 %v51
  %v132 = vpop.f32.mrb[0].mxu0
  %v133 = vadd.f32 %v32, %v132
  %v134 = vpop.f32.mrb[0].mxu0
  %135 = vmatprep.mubr.f32.mxu0 0.0
  %136 = vmatmul.mubr.f32.gmra.mrb[0].mxu0 %v54
  %v137 = vpop.f32.mrb[0].mxu0
  %v138 = vadd.f32 %v37, %v137
  %v139 = vpop.f32.mrb[0].mxu0
  %140 = vmatprep.mubr.f32.mxu0 0.0
  %141 = vmatmul.mubr.f32.gmra.mrb[0].mxu0 %v57
  %v142 = vpop.f32.mrb[0].mxu0
  %v143 = vadd.f32 %v42, %v142
  %v144 = vpop.f32.mrb[0].mxu0
  %145 = vmatprep.mubr.f32.mxu0 0.0
  %146 = vmatmul.mubr.f32.gmra.mrb[0].mxu0 %v60
  %v147 = vpop.f32.mrb[0].mxu0
  %v148 = vadd.f32 %v47, %v147
  %v149 = vpop.f32.mrb[0].mxu0
  %150 = vdwg.mxu0
  %v151 = vmax.f32 %v133, 0.0
  %v152 = vmax.f32 %v138, 0.0
  %v153 = vmax.f32 %v143, 0.0
  %v154 = vmax.f32 %v148, 0.0
  %v155 = vld [vmem:[%s3] sm:$0x7]
  %v156 = vld [vmem:[%s4] sm:$0x7]
  %158 = vset.pattern.permute.xlu0 0
  %159 = vperm.xlu0 %158, %v156
  %v160 = vpop.permute.xlu0 %159
  %vm162 = vcmask 261120
  %v164 = vsel %vm162, %v155, 0
  %166 = vmatprep.subr.mxu0 0.0
  %167 = vmatpush1.msra.mxu0 %v151
  %168 = vmatprep.subr.mxu0 0.0
  %169 = vmatpush1.msra.mxu0 %v152
  %170 = vmatprep.subr.mxu0 0.0
  %171 = vmatpush1.msra.mxu0 %v153
  %172 = vmatprep.subr.mxu0 0.0
  %173 = vmatpush1.msra.mxu0 %v154
  %174 = vmatprep.subr.mxu0 0.0
  %175 = vmatpush1.msra.mxu0 0.0
  %176 = vmatprep.subr.mxu0 0.0
  %177 = vmatpush1.msra.mxu0 0.0
  %178 = vmatprep.subr.mxu0 0.0
  %179 = vmatpush1.msra.mxu0 0.0
  %180 = vmatprep.subr.mxu0 0.0
  %181 = vmatpush1.msra.mxu0 0.0
  %182 = vmatprep.subr.mxu0 0.0
  %183 = vmatpush1.msra.mxu0 0.0
  %184 = vmatprep.subr.mxu0 0.0
  %185 = vmatpush1.msra.mxu0 0.0
  %186 = vmatprep.subr.mxu0 0.0
  %187 = vmatpush1.msra.mxu0 0.0
  %188 = vmatprep.subr.mxu0 0.0
  %189 = vmatpush1.msra.mxu0 0.0
  %190 = vmatprep.subr.mxu0 0.0
  %191 = vmatpush1.msra.mxu0 0.0
  %192 = vmatprep.subr.mxu0 0.0
  %193 = vmatpush1.msra.mxu0 0.0
  %194 = vmatprep.subr.mxu0 0.0
  %195 = vmatpush1.msra.mxu0 0.0
  %196 = vmatprep.subr.mxu0 0.0
  %197 = vmatpush1.msra.mxu0 0.0
  %198 = vmatprep.subr.mxu0 0.0
  %199 = vmatpush1.msra.mxu0 0.0
  %200 = vmatprep.subr.mxu0 0.0
  %201 = vmatpush1.msra.mxu0 0.0
  %202 = vmatprep.subr.mxu0 0.0
  %203 = vmatpush1.msra.mxu0 0.0
  %204 = vmatprep.subr.mxu0 0.0
  %205 = vmatpush1.msra.mxu0 0.0
  %206 = vmatprep.subr.mxu0 0.0
  %207 = vmatpush1.msra.mxu0 0.0
  %208 = vmatprep.subr.mxu0 0.0
  %209 = vmatpush1.msra.mxu0 0.0
  %210 = vmatprep.subr.mxu0 0.0
  %211 = vmatpush1.msra.mxu0 0.0
  %212 = vmatprep.subr.mxu0 0.0
  %213 = vmatpush1.msra.mxu0 0.0
  %214 = vmatprep.subr.mxu0 0.0
  %215 = vmatpush1.msra.mxu0 0.0
  %216 = vmatprep.subr.mxu0 0.0
  %217 = vmatpush1.msra.mxu0 0.0
  %218 = vmatprep.subr.mxu0 0.0
  %219 = vmatpush1.msra.mxu0 0.0
  %220 = vmatprep.subr.mxu0 0.0
  %221 = vmatpush1.msra.mxu0 0.0
  %222 = vmatprep.subr.mxu0 0.0
  %223 = vmatpush1.msra.mxu0 0.0
  %224 = vmatprep.subr.mxu0 0.0
  %225 = vmatpush1.msra.mxu0 0.0
  %226 = vmatprep.subr.mxu0 0.0
  %227 = vmatpush1.msra.mxu0 0.0
  %228 = vmatprep.subr.mxu0 0.0
  %229 = vmatpush1.msra.mxu0 0.0
  %230 = vmatprep.mubr.f32.mxu0 0.0
  %231 = vmatmul.mubr.f32.gmra.mrb[0].mxu0 %v164
  %v232 = vpop.f32.mrb[0].mxu0
  %v233 = vadd.f32 %v160, %v232
  %v234 = vpop.f32.mrb[0].mxu0
  %235 = vdwg.mxu0
  %v236 = vmax.f32 %v233, -1.0
  %v237 = vmin.f32 %v236, 1.0
  %238 = vst [vmem:[%s5] sm:$0x7] %v237
  // Predicated region
  $region22: #{mlp_forward.1} parent=0 // pred_check
    _
  $region23: #{mlp_forward.1} parent=0 // pred_check_branch
    %240 = sbr.rel (0) target = $region25
  $region24: #{mlp_forward.1} parent=0 // pred_region
    _
  $region25: #{mlp_forward.1} parent=0 // pred_fallthru
    _
  // Predicated region
  $region26: #{mlp_forward.1} parent=0 // pred_check
    _
  $region27: #{mlp_forward.1} parent=0 // pred_check_branch
    %242 = sbr.rel (0) target = $region29
  $region28: #{mlp_forward.1} parent=0 // pred_region
    _
  $region29: #{mlp_forward.1} parent=0 // pred_fallthru
    _

</llo_original>
